<compile_context>
chip_gen: v5e
topology: v5e:2x2
jax: 0.10.0
libtpu: 0.0.40
codegen_flags: <defaults>
</compile_context>

<pallas_src>
import functools
import math

import jax
import jax.numpy as jnp
from jax.experimental import pallas as pl
from jax.experimental.pallas import tpu as pltpu

_LANE = 128


def _packed_sublanes(dtype):
    """Packed sublane count per vreg: 8 (f32), 16 (bf16), 32 (int8/fp8)."""
    itemsize = jnp.dtype(dtype).itemsize
    return max(8, 32 // max(itemsize, 1))


def _vmem_budget():
    """Returns (resident-tile byte budget, physical VMEM capacity)."""
    try:
        cap = int(pltpu.get_tpu_info().vmem_capacity_bytes)
    except Exception:  # conservative default = v7x (64 MiB per TensorCore)
        cap = 64 << 20
    budget = max(8 << 20, min(cap // 2, 64 << 20))
    return budget, cap


def _pick_rows(rows, width, itemsize, sub, n_resident, budget):
    """Rows per block: sublane-aligned, multi-MiB tiles, >=2 row tiles if possible."""
    if rows <= sub:
        return rows
    per_tile = max(budget // max(n_resident, 1), sub * width * itemsize)
    br = max(sub, (per_tile // (width * itemsize)) // sub * sub)
    if rows >= 2 * sub:
        # Keep at least two row tiles so the "parallel" axis can be sharded
        # across both TensorCores on v7x (harmless on single-core v5e/v6e).
        br = min(br, max(sub, (rows // (2 * sub)) * sub))
    return int(min(br, rows))


def _pick_col_block(covered_tiles, itemsize, sub, n_resident, budget):
    """Largest 128-multiple column block dividing the covered width that fits VMEM."""
    for k in range(covered_tiles, 0, -1):
        if covered_tiles % k == 0 and n_resident * sub * k * _LANE * itemsize <= budget:
            return k * _LANE
    return _LANE


# ----------------------------- kernel bodies ------------------------------ #

def _copy_kernel(_base_ref, src_ref, out_ref):
    # Lane-aligned interchange_dim: covered columns are a pure source copy.
    # `base` is only present so it can be aliased into the output (its tiny
    # constant block is never read); untouched columns pass through for free.
    out_ref[...] = src_ref[...]


def _boundary_select_kernel(ic, col_block, base_ref, src_ref, out_ref):
    # Covered columns include a partial boundary lane tile: select per lane.
    j = pl.program_id(1)
    lane = jax.lax.broadcasted_iota(jnp.int32, (1, out_ref.shape[-1]), 1)
    mask = (j * col_block + lane) < ic
    out_ref[...] = jnp.where(mask, src_ref[...], base_ref[...])


def _lane_packed_select_kernel(ic, col_ids_ref, base_ref, src_ref, out_ref):
    # Lane-dense packed layout: the per-lane original feature index is
    # precomputed in the wrapper (avoids in-kernel integer mod).
    mask = col_ids_ref[...] < ic
    out_ref[...] = jnp.where(mask, src_ref[...], base_ref[...])


# ----------------------------- pallas_call paths -------------------------- #

def _swap_columns_aliased(base2, src2, ic, d, rows, itemsize, sub, budget, vmem_cap):
    """d % 128 == 0: the grid covers only the first ceil(ic/128) lane tiles and
    `base` is donated to the output, so uncovered columns move zero bytes."""
    aligned = (ic % _LANE == 0)
    covered = ic if aligned else min(d, pl.cdiv(ic, _LANE) * _LANE)
    n_arrays = 2 if aligned else 3            # (src, out) vs (base, src, out)
    n_resident = 2 * n_arrays                 # double-buffered pipeline
    cw = _pick_col_block(covered // _LANE, itemsize, sub, n_resident, budget)
    block_rows = _pick_rows(rows, cw, itemsize, sub, n_resident, budget)
    grid = (pl.cdiv(rows, block_rows), covered // cw)

    resident = n_resident * block_rows * cw * itemsize
    vmem_limit = int(min(vmem_cap, max(resident + (8 << 20), 24 << 20)))

    data_spec = pl.BlockSpec((block_rows, cw), lambda i, j: (i, j))
    if aligned:
        kernel = _copy_kernel
        # Tiny constant block; never read, only there so base can be aliased.
        base_spec = pl.BlockSpec((min(8, rows), _LANE), lambda i, j: (0, 0))
        bytes_accessed = 2 * rows * ic * itemsize
    else:
        kernel = functools.partial(_boundary_select_kernel, ic, cw)
        base_spec = data_spec
        bytes_accessed = 3 * rows * covered * itemsize

    return pl.pallas_call(
        kernel,
        out_shape=jax.ShapeDtypeStruct((rows, d), base2.dtype),
        grid=grid,
        in_specs=[base_spec, data_spec],
        out_specs=data_spec,
        input_output_aliases={0: 0},          # donate base -> output passthrough
        compiler_params=pltpu.CompilerParams(
            dimension_semantics=("parallel", "parallel"),
            vmem_limit_bytes=vmem_limit,
        ),
        cost_estimate=pl.CostEstimate(
            flops=rows * covered, transcendentals=0,
            bytes_accessed=int(bytes_accessed)),
    )(base2, src2)


def _swap_lane_packed(base2, src2, ic, d, rows, itemsize, sub, budget, vmem_cap):
    """d not a multiple of 128 (e.g. small embed_dim): repack the flat buffer
    into a lane-dense (rows/k, lcm(d,128)) view so stores are full-lane vst."""
    fold = _LANE // math.gcd(d, _LANE)        # original rows folded per packed row
    if fold > 1 and rows % fold == 0:
        w = d * fold                          # = lcm(d, 128), multiple of 128
        r = rows // fold
        base_p = base2.reshape(r, w)
        src_p = src2.reshape(r, w)
    else:
        w, r = d, rows                        # fallback: full-width blocks
        base_p, src_p = base2, src2

    # Per-lane original feature index, computed once outside the kernel and
    # broadcast to every grid step via a tiny (1, w) block.
    col_ids = (jnp.arange(w, dtype=jnp.int32) % d).reshape(1, w)

    n_resident = 6                            # 3 streamed arrays x 2 buffers
    block_rows = _pick_rows(r, w, itemsize, sub, n_resident, budget)
    grid = (pl.cdiv(r, block_rows),)
    resident = n_resident * block_rows * w * itemsize
    vmem_limit = int(min(vmem_cap, max(resident + (8 << 20), 24 << 20)))

    spec = pl.BlockSpec((block_rows, w), lambda i: (i, 0))
    col_spec = pl.BlockSpec((1, w), lambda i: (0, 0))
    out = pl.pallas_call(
        functools.partial(_lane_packed_select_kernel, ic),
        out_shape=jax.ShapeDtypeStruct((r, w), base2.dtype),
        grid=grid,
        in_specs=[col_spec, spec, spec],
        out_specs=spec,
        compiler_params=pltpu.CompilerParams(
            dimension_semantics=("parallel",),
            vmem_limit_bytes=vmem_limit,
        ),
        cost_estimate=pl.CostEstimate(
            flops=r * w, transcendentals=0,
            bytes_accessed=3 * r * w * itemsize),
    )(col_ids, base_p, src_p)
    return out.reshape(rows, d)


# --------------------------------- wrapper --------------------------------- #

def skip_intervention(base, source, interchange_dim=None, subspaces=None):
    """SkipIntervention.forward: out[..., :ic] = source[..., :ic], rest from base."""
    if subspaces is not None:
        # TODO(synk): subspaces / subspace_partition column-list swaps not implemented.
        raise NotImplementedError("subspaces path is not implemented")
    if base.shape != source.shape:
        raise ValueError("base/source shape mismatch")
    if base.dtype != source.dtype:
        raise ValueError("base/source dtype mismatch")

    orig_shape = base.shape
    d = int(orig_shape[-1])
    ic = d if interchange_dim is None else int(interchange_dim)
    ic = max(0, min(ic, d))

    # Trivial fast paths: the op is pure HBM streaming, so skip it entirely.
    if ic == 0:
        return base
    if ic == d:
        return source

    itemsize = jnp.dtype(base.dtype).itemsize
    sub = _packed_sublanes(base.dtype)
    budget, vmem_cap = _vmem_budget()

    base2 = base.reshape(-1, d)
    src2 = source.reshape(-1, d)
    rows = base2.shape[0]

    if d % _LANE == 0:
        out2 = _swap_columns_aliased(base2, src2, ic, d, rows, itemsize, sub,
                                     budget, vmem_cap)
    else:
        out2 = _swap_lane_packed(base2, src2, ic, d, rows, itemsize, sub,
                                 budget, vmem_cap)
    return out2.reshape(orig_shape)


def _reference(base, source, interchange_dim):
    """Plain-JAX reference mirroring the PyTorch forward (subspaces=None)."""
    d = base.shape[-1]
    mask = jnp.arange(d) < interchange_dim
    return jnp.where(mask, source, base)


if __name__ == "__main__":
    key = jax.random.PRNGKey(0)
    batch, seq, embed_dim = 2, 8, 32            # small, module-consistent shapes
    k1, k2, k3, k4 = jax.random.split(key, 4)

    base = jax.random.normal(k1, (batch, seq, embed_dim), dtype=jnp.float32)
    source = jax.random.normal(k2, (batch, seq, embed_dim), dtype=jnp.float32)

    # As if the user called set_interchange_dim(20); default would be embed_dim.
    interchange_dim = 20
    out = jax.block_until_ready(skip_intervention(base, source, interchange_dim))
    assert out.shape == base.shape and out.dtype == base.dtype
    assert jnp.array_equal(out, _reference(base, source, interchange_dim)), \
        "mismatch (lane-packed path)"

    # Column-restricted, base-aliased paths (embed_dim a multiple of 128).
    b2 = jax.random.normal(k3, (16, 256), dtype=jnp.float32)
    s2 = jax.random.normal(k4, (16, 256), dtype=jnp.float32)
    for ic in (128, 100):   # lane-aligned copy path and boundary-tile select path
        o2 = jax.block_until_ready(skip_intervention(b2, s2, ic))
        assert jnp.array_equal(o2, _reference(b2, s2, ic)), f"mismatch (ic={ic})"

    # Trivial fast paths (no kernel launch).
    assert jnp.array_equal(skip_intervention(base, source, 0), base)
    assert jnp.array_equal(skip_intervention(base, source, embed_dim), source)

    print("KERNEL_OK")
</pallas_src>

<mosaic_0001>
module attributes {stable_mosaic.version = 11 : i64} {
  func.func @_lane_packed_select_kernel(%arg0: i32, %arg1: memref<1x128xi32, #tpu.memory_space<vmem>>, %arg2: memref<4x128xf32, #tpu.memory_space<vmem>>, %arg3: memref<4x128xf32, #tpu.memory_space<vmem>>, %arg4: memref<4x128xf32, #tpu.memory_space<vmem>>) attributes {dimension_semantics = [#tpu.dimension_semantics<parallel>], iteration_bounds = array<i64: 1>, scalar_prefetch = 0 : i64, scratch_operands = 0 : i64, tpu.core_type = #tpu.core_type<tc>, window_params = [{pipeline_mode = #tpu.pipeline_mode<synchronous>, transform_indices = @transform_0, window_bounds = array<i64: 1, 128>}, {transform_indices = @transform_1, window_bounds = array<i64: 4, 128>}, {transform_indices = @transform_2, window_bounds = array<i64: 4, 128>}, {transform_indices = @transform_3, window_bounds = array<i64: 4, 128>}]} {
    %c0 = arith.constant 0 : index
    %c0_0 = arith.constant 0 : index
    %0 = vector.load %arg1[%c0, %c0_0] : memref<1x128xi32, #tpu.memory_space<vmem>>, vector<1x128xi32>
    %c20_i32 = arith.constant 20 : i32
    %1 = vector.broadcast %c20_i32 : i32 to vector<1x128xi32>
    %2 = arith.cmpi slt, %0, %1 : vector<1x128xi32>
    %c0_1 = arith.constant 0 : index
    %c0_2 = arith.constant 0 : index
    %3 = vector.load %arg3[%c0_1, %c0_2] : memref<4x128xf32, #tpu.memory_space<vmem>>, vector<4x128xf32>
    %c0_3 = arith.constant 0 : index
    %c0_4 = arith.constant 0 : index
    %4 = vector.load %arg2[%c0_3, %c0_4] : memref<4x128xf32, #tpu.memory_space<vmem>>, vector<4x128xf32>
    %5 = vector.shape_cast %2 : vector<1x128xi1> to vector<1x128xi1>
    %6 = vector.broadcast %5 : vector<1x128xi1> to vector<4x128xi1>
    %7 = arith.select %6, %3, %4 : vector<4x128xi1>, vector<4x128xf32>
    %c0_5 = arith.constant 0 : index
    %c0_6 = arith.constant 0 : index
    %8 = vector.load %arg4[%c0_5, %c0_6] : memref<4x128xf32, #tpu.memory_space<vmem>>, vector<4x128xf32>
    tpu.vector_store %arg4[%c0_5, %c0_6], %7 {strides = array<i32>} : memref<4x128xf32, #tpu.memory_space<vmem>>, vector<4x128xf32>,
    return
  }
  func.func @transform_0(%arg0: i32) -> (i32, i32) {
    %c0_i32 = arith.constant 0 : i32
    %c0_i32_0 = arith.constant 0 : i32
    %c0_i32_1 = arith.constant 0 : i32
    return %c0_i32, %c0_i32_0 : i32, i32
  }
  func.func @transform_1(%arg0: i32) -> (i32, i32) {
    %c0_i32 = arith.constant 0 : i32
    %c0_i32_0 = arith.constant 0 : i32
    return %arg0, %c0_i32 : i32, i32
  }
  func.func @transform_2(%arg0: i32) -> (i32, i32) {
    %c0_i32 = arith.constant 0 : i32
    %c0_i32_0 = arith.constant 0 : i32
    return %arg0, %c0_i32 : i32, i32
  }
  func.func @transform_3(%arg0: i32) -> (i32, i32) {
    %c0_i32 = arith.constant 0 : i32
    %c0_i32_0 = arith.constant 0 : i32
    return %arg0, %c0_i32 : i32, i32
  }
}

</mosaic_0001>

<llo_original>
// kernel: tpu_custom_call.1
$region0: #{tpu_custom_call.1}
  #allocation0 [shape = 'u32[]', space=smem, size = 0x4, offset = 0x4, fixed_abs, tag = 'smem constant byte address 0x4 - core index']
  #allocation1 [shape = 'u32[72,128]{1,0:T(1,128)}', space=vmem, size = 0x9000, scoped, tag = 'internal scratch']
  %s0 = inlined_call_operand.hbm [shape: s32[1,128], index: 0, kind: input, shape index: {}]
  %s1 = inlined_call_operand.hbm [shape: f32[4,128], index: 1, kind: input, shape index: {}]
  %s2 = inlined_call_operand.hbm [shape: f32[4,128], index: 2, kind: input, shape index: {}]
  %s3 = inlined_call_operand.hbm [shape: f32[4,128], index: 3, kind: output, shape index: {}]
  %s4 = sld [smem:[#allocation0]]
  $region34: #{tpu_custom_call.1} parent=0
    _
  %s6 = ssub.s32 1, %s4
  %s7 = scalar_select 0, %s6, %s4
  $region1: #{tpu_custom_call.1} parent=0
    #allocation2 [shape = 'u8[512]{0}', space=vmem, size = 0x400, scoped, tag = 'input window, operand 0, single buffered']
    #allocation3 [shape = 's32[1]{0}', space=sflag, size = 0x4, scoped, tag = 'scoped memory for tpu_custom_call.1']
    #allocation4 [shape = 's32[1]{0}', space=sflag, size = 0x4, scoped, tag = 'scoped memory for tpu_custom_call.1']
    #allocation5 [shape = 'u8[2048]{0}', space=vmem, size = 0x800, scoped, tag = 'input window, operand 1, single buffered']
    #allocation6 [shape = 's32[1]{0}', space=sflag, size = 0x4, scoped, tag = 'scoped memory for tpu_custom_call.1']
    #allocation7 [shape = 'u8[2048]{0}', space=vmem, size = 0x800, scoped, tag = 'input window, operand 2, single buffered']
    #allocation8 [shape = 'u8[2048]{0}', space=vmem, size = 0x800, scoped, tag = 'output window, operand 0, single buffered']
    %8 = vsyncpa [#allocation3], 0
    %9 = vsyncpa [#allocation6], 0
    %10 = vsyncpa [#allocation4], 0
    // Predicated region
    $region2: #{tpu_custom_call.1} parent=1 // pred_check
      _
    $region3: #{tpu_custom_call.1} parent=1 // pred_check_branch
      %12 = sbr.rel (0) target = $region5
    $region4: #{tpu_custom_call.1} parent=1 // pred_region
      %14 = vsyncadd [#allocation3], 0
      %s16 = sshll.u32 %s0, 4
      %s17 = int_to_ptr.hbm [resolvable:$true] %s16
      %s18 = sshll.u32 [#allocation2], 4
      %s19 = int_to_ptr.vmem [resolvable:$true] %s18
      %21 = dma.hbm_to_vmem [thread:$0]  %s17, 16, %s19, [#allocation3]
    $region5: #{tpu_custom_call.1} parent=1 // pred_fallthru
      _
    // Predicated region
    $region6: #{tpu_custom_call.1} parent=1 // pred_check
      _
    $region7: #{tpu_custom_call.1} parent=1 // pred_check_branch
      %23 = sbr.rel (0) target = $region9
    $region8: #{tpu_custom_call.1} parent=1 // pred_region
      %25 = vsyncadd [#allocation6], 0
      %s27 = sshll.u32 %s1, 4
      %s28 = int_to_ptr.hbm [resolvable:$true] %s27
      %s29 = sshll.u32 [#allocation5], 4
      %s30 = int_to_ptr.vmem [resolvable:$true] %s29
      %32 = dma.hbm_to_vmem [thread:$0]  %s28, 64, %s30, [#allocation6]
    $region9: #{tpu_custom_call.1} parent=1 // pred_fallthru
      _
    // Predicated region
    $region10: #{tpu_custom_call.1} parent=1 // pred_check
      _
    $region11: #{tpu_custom_call.1} parent=1 // pred_check_branch
      %34 = sbr.rel (0) target = $region13
    $region12: #{tpu_custom_call.1} parent=1 // pred_region
      %36 = vsyncadd [#allocation6], 0
      %s38 = sshll.u32 %s2, 4
      %s39 = int_to_ptr.hbm [resolvable:$true] %s38
      %s40 = sshll.u32 [#allocation7], 4
      %s41 = int_to_ptr.vmem [resolvable:$true] %s40
      %43 = dma.hbm_to_vmem [thread:$0]  %s39, 64, %s41, [#allocation6]
    $region13: #{tpu_custom_call.1} parent=1 // pred_fallthru
      _
    // Predicated region
    $region14: #{tpu_custom_call.1} parent=1 // pred_check
      _
    $region15: #{tpu_custom_call.1} parent=1 // pred_check_branch
      %45 = sbr.rel (0) target = $region17
    $region16: #{tpu_custom_call.1} parent=1 // pred_region
      %47 = dma.done [#allocation3], 16
    $region17: #{tpu_custom_call.1} parent=1 // pred_fallthru
      _
    // Predicated region
    $region18: #{tpu_custom_call.1} parent=1 // pred_check
      _
    $region19: #{tpu_custom_call.1} parent=1 // pred_check_branch
      %49 = sbr.rel (0) target = $region21
    $region20: #{tpu_custom_call.1} parent=1 // pred_region
      %51 = dma.done [#allocation6], 64
    $region21: #{tpu_custom_call.1} parent=1 // pred_fallthru
      _
    // Predicated region
    $region22: #{tpu_custom_call.1} parent=1 // pred_check
      _
    $region23: #{tpu_custom_call.1} parent=1 // pred_check_branch
      %53 = sbr.rel (0) target = $region25
    $region24: #{tpu_custom_call.1} parent=1 // pred_region
      %55 = dma.done [#allocation6], 64
    $region25: #{tpu_custom_call.1} parent=1 // pred_fallthru
      _
    %v56 = vld [vmem:[#allocation2] sm:$0x1]
    %vm57 = vcmp.lt.s32.totalorder %v56, 20
    %v58 = vld [vmem:[#allocation7] sm:$0xf]
    %v59 = vld [vmem:[#allocation5] sm:$0xf]
    %v60 = vsel %vm57, 1, 0
    %v61 = vperm.slane %v60, 0
    %vm62 = vcmp.eq.s32.totalorder %v61, 1
    %v63 = vsel %vm62, %v58, %v59
    %64 = vst [vmem:[#allocation8] sm:$0xf] %v63
    // Predicated region
    $region26: #{tpu_custom_call.1} parent=1 // pred_check
      _
    $region27: #{tpu_custom_call.1} parent=1 // pred_check_branch
      %66 = sbr.rel (0) target = $region29
    $region28: #{tpu_custom_call.1} parent=1 // pred_region
      %68 = vsyncadd [#allocation4], 0
      %s70 = sshll.u32 [#allocation8], 4
      %s71 = int_to_ptr.vmem [resolvable:$true] %s70
      %s72 = sshll.u32 %s3, 4
      %s73 = int_to_ptr.hbm [resolvable:$true] %s72
      %75 = dma.vmem_to_hbm [thread:$0]  %s71, 64, %s73, [#allocation4]
    $region29: #{tpu_custom_call.1} parent=1 // pred_fallthru
      _
    // Predicated region
    $region30: #{tpu_custom_call.1} parent=1 // pred_check
      _
    $region31: #{tpu_custom_call.1} parent=1 // pred_check_branch
      %77 = sbr.rel (0) target = $region33
    $region32: #{tpu_custom_call.1} parent=1 // pred_region
      %79 = dma.done [#allocation4], 64
    $region33: #{tpu_custom_call.1} parent=1 // pred_fallthru
      _
    %80 = vsyncpa [#allocation3], 1
    %81 = vsyncpa [#allocation6], 1
    %82 = vsyncpa [#allocation4], 1

</llo_original>
